<compile_context>
chip_gen: v7x
topology: tpu7x:2x2x1
jax: 0.10.0
libtpu: 0.0.40
codegen_flags: <defaults>
</compile_context>

<pallas_src>
import math

import jax
import jax.numpy as jnp
from jax import lax
from jax.experimental import pallas as pl
from jax.experimental.pallas import tpu as pltpu
import numpy as np


_ROW_TILE = 2048   # spatial rows per grid step (multiple of 128)


def _cdiv(a, b):
    return (a + b - 1) // b


def _round_up(a, m):
    return ((a + m - 1) // m) * m


def _head_kernel(x_ref, w_ref, b_ref, o_ref):
    # x_ref: (Cin, t_hw) f32/bf16   w_ref: (Cin, Cout) bf16
    # b_ref: (1, Cout) f32          o_ref: (t_hw, Cout) bf16
    x = x_ref[...].astype(jnp.bfloat16)            # no-op if input already bf16
    # Contract the channel axis of both operands: (Cin, t)^T @ (Cin, Cout).
    y = lax.dot_general(
        x, w_ref[...],
        dimension_numbers=(((0,), (0,)), ((), ())),
        preferred_element_type=jnp.float32)        # (t_hw, Cout) f32 on the MXU
    y = y + b_ref[...]                             # bias add in f32
    # sigmoid(y) = 1 / (1 + exp(-y)); exp and approx reciprocal both run on EUP
    # (f32: correct on v5e, hidden under DMA on v6e/v7x).  bf16 only at store.
    o_ref[...] = pl.reciprocal(1.0 + jnp.exp(-y), approx=True).astype(o_ref.dtype)


def _pointwise_conv_sigmoid_nchw(x_nchw, w_bf16, b_f32):
    """sigmoid(conv1x1(x_nchw) + b) -> (B, H*W, Cout) bf16 (row-major = NHWC rows)."""
    B, Cin, H, W = x_nchw.shape
    HW = H * W
    Cout = w_bf16.shape[1]

    x_flat = x_nchw.reshape(B, Cin, HW)            # free reshape (contiguous)
    b2 = b_f32.reshape(1, Cout).astype(jnp.float32)

    t_hw = min(HW, _ROW_TILE)                      # multiple of 128, or full HW
    if B == 1 and HW > 128:
        # guarantee >= 2 grid steps at batch 1 so v7x's two TCs both get work
        t_hw = min(t_hw, _round_up(_cdiv(HW, 2), 128))
    n_hw = _cdiv(HW, t_hw)                         # trailing block masked if uneven

    out = pl.pallas_call(
        _head_kernel,
        out_shape=jax.ShapeDtypeStruct((B, HW, Cout), jnp.bfloat16),
        grid_spec=pltpu.PrefetchScalarGridSpec(
            num_scalar_prefetch=0,
            grid=(B, n_hw),
            in_specs=[
                pl.BlockSpec((None, Cin, t_hw), lambda b, i: (b, 0, i)),
                pl.BlockSpec((Cin, Cout), lambda b, i: (0, 0)),   # weight resident
                pl.BlockSpec((1, Cout), lambda b, i: (0, 0)),     # bias resident
            ],
            out_specs=pl.BlockSpec((None, t_hw, Cout), lambda b, i: (b, i, 0)),
        ),
        compiler_params=pltpu.CompilerParams(
            dimension_semantics=("parallel", "parallel"),
            vmem_limit_bytes=32 * 1024 * 1024),
    )(x_flat, w_bf16, b2)
    return out


class Yolov5HeadPallas:
    """JAX/Pallas re-implementation of the PyTorch Yolov5Head forward pass."""

    def __init__(self, inplanes, per_level_num_anchors=3, num_classes=80, key=None):
        self.per_level_num_anchors = per_level_num_anchors
        self.num_classes = num_classes
        cout = per_level_num_anchors * (1 + 4 + num_classes)
        if key is None:
            key = jax.random.PRNGKey(0)

        self.weights = []   # (Cin, Cout) bf16  (== conv weight[:, :, 0, 0].T)
        self.biases = []    # (Cout,) f32
        strides = (8, 16, 32)   # P3, P4, P5
        for cin, stride in zip(inplanes, strides):
            key, kw, kb = jax.random.split(key, 3)
            # deterministic init mimicking torch Conv2d default (uniform +-1/sqrt(fan_in))
            bound = 1.0 / math.sqrt(cin)
            w = jax.random.uniform(kw, (cin, cout), jnp.float32, -bound, bound)
            b = jax.random.uniform(kb, (cout,), jnp.float32, -bound, bound)
            # replicate the prior-bias adjustment from __init__
            b = b.reshape(per_level_num_anchors, 1 + 4 + num_classes)
            b = b.at[:, 0].add(math.log(8.0 / (640.0 / stride) ** 2))
            b = b.at[:, 5:].add(math.log(0.6 / (num_classes - 0.99)))
            b = b.reshape(-1)
            self.weights.append(w.astype(jnp.bfloat16))   # bf16 weights: MXU-native
            self.biases.append(b)

    def __call__(self, inputs):
        # inputs: list of NCHW tensors [P3, P4, P5] (f32 or bf16; bf16 preferred
        # when the backbone can emit it -- halves the dominant x HBM read).
        A = self.per_level_num_anchors
        outs = []
        for x, w, b in zip(inputs, self.weights, self.biases):
            B, C, H, W = x.shape
            y = _pointwise_conv_sigmoid_nchw(x, w, b)     # (B, H*W, Cout) bf16
            outs.append(y.reshape(B, H, W, A, -1))        # free metadata reshape
        return outs


def _reference(inputs, head):
    """Plain-JAX reference (same bf16 matmul cast, exact sigmoid, bf16 output)."""
    outs = []
    A = head.per_level_num_anchors
    for x, w, b in zip(inputs, head.weights, head.biases):
        B, C, H, W = x.shape
        rows = jnp.transpose(x, (0, 2, 3, 1)).reshape(B * H * W, C)
        logits = jnp.dot(rows.astype(jnp.bfloat16), w,
                         preferred_element_type=jnp.float32) + b[None, :]
        y = jax.nn.sigmoid(logits).astype(jnp.bfloat16)
        outs.append(y.reshape(B, H, W, A, -1))
    return outs


if __name__ == "__main__":
    key = jax.random.PRNGKey(0)
    inplanes = [32, 64, 128]
    batch = 2
    spatial = [16, 8, 4]    # P3 / P4 / P5 feature map sizes

    k1, k2, k3, khead = jax.random.split(key, 4)
    P3 = jax.random.normal(k1, (batch, inplanes[0], spatial[0], spatial[0]), jnp.float32)
    P4 = jax.random.normal(k2, (batch, inplanes[1], spatial[1], spatial[1]), jnp.float32)
    P5 = jax.random.normal(k3, (batch, inplanes[2], spatial[2], spatial[2]), jnp.float32)

    head = Yolov5HeadPallas(inplanes, per_level_num_anchors=3,
                            num_classes=80, key=khead)

    outs = head([P3, P4, P5])
    outs = [jax.block_until_ready(o) for o in outs]

    refs = _reference([P3, P4, P5], head)
    for o, r, hw in zip(outs, refs, spatial):
        assert o.shape == (batch, hw, hw, 3, 85), o.shape
        assert o.dtype == jnp.bfloat16, o.dtype
        np.testing.assert_allclose(np.asarray(o, dtype=np.float32),
                                   np.asarray(r, dtype=np.float32),
                                   rtol=0.0, atol=8e-3)

    print("KERNEL_OK")
</pallas_src>

<mosaic_0001>
module attributes {stable_mosaic.version = 11 : i64} {
  func.func @_head_kernel(%arg0: i32, %arg1: i32, %arg2: memref<1x32x256xf32, #tpu.memory_space<vmem>>, %arg3: memref<32x255xbf16, #tpu.memory_space<vmem>>, %arg4: memref<1x255xf32, #tpu.memory_space<vmem>>, %arg5: memref<1x256x255xbf16, #tpu.memory_space<vmem>>) attributes {dimension_semantics = [#tpu.dimension_semantics<parallel>, #tpu.dimension_semantics<parallel>], iteration_bounds = array<i64: 2, 1>, scalar_prefetch = 0 : i64, scratch_operands = 0 : i64, tpu.core_type = #tpu.core_type<tc>, window_params = [{transform_indices = @transform_0, window_bounds = array<i64: 1, 32, 256>}, {pipeline_mode = #tpu.pipeline_mode<synchronous>, transform_indices = @transform_1, window_bounds = array<i64: 32, 255>}, {pipeline_mode = #tpu.pipeline_mode<synchronous>, transform_indices = @transform_2, window_bounds = array<i64: 1, 255>}, {transform_indices = @transform_3, window_bounds = array<i64: 1, 256, 255>}]} {
    %c0 = arith.constant 0 : index
    %c0_0 = arith.constant 0 : index
    %c0_1 = arith.constant 0 : index
    %0 = vector.load %arg2[%c0, %c0_0, %c0_1] : memref<1x32x256xf32, #tpu.memory_space<vmem>>, vector<1x32x256xf32>
    %1 = vector.shape_cast %0 : vector<1x32x256xf32> to vector<32x256xf32>
    %2 = arith.truncf %1 : vector<32x256xf32> to vector<32x256xbf16>
    %c0_2 = arith.constant 0 : index
    %c0_3 = arith.constant 0 : index
    %3 = vector.load %arg3[%c0_2, %c0_3] : memref<32x255xbf16, #tpu.memory_space<vmem>>, vector<32x255xbf16>
    %cst = arith.constant dense<0.000000e+00> : vector<256x255xf32>
    %4 = tpu.matmul %2, %3, %cst {dimension_numbers = #tpu.dot_dimension_numbers<[0], [0], [1], [1], [0, 1, 1, 1], [], []>} : vector<32x256xbf16>, vector<32x255xbf16>, vector<256x255xf32> -> vector<256x255xf32>
    %c0_4 = arith.constant 0 : index
    %c0_5 = arith.constant 0 : index
    %5 = vector.load %arg4[%c0_4, %c0_5] : memref<1x255xf32, #tpu.memory_space<vmem>>, vector<1x255xf32>
    %6 = vector.broadcast %5 : vector<1x255xf32> to vector<256x255xf32>
    %7 = arith.addf %4, %6 : vector<256x255xf32>
    %cst_6 = arith.constant 0.000000e+00 : f32
    %8 = vector.broadcast %cst_6 : f32 to vector<256x255xf32>
    %9 = arith.subf %8, %7 : vector<256x255xf32>
    %10 = math.exp %9 : vector<256x255xf32>
    %cst_7 = arith.constant 1.000000e+00 : f32
    %11 = vector.broadcast %cst_7 : f32 to vector<256x255xf32>
    %12 = arith.addf %11, %10 : vector<256x255xf32>
    %13 = tpu.reciprocal %12 {approx = true} : vector<256x255xf32> -> vector<256x255xf32>
    %14 = arith.truncf %13 : vector<256x255xf32> to vector<256x255xbf16>
    %c0_8 = arith.constant 0 : index
    %c0_9 = arith.constant 0 : index
    %c0_10 = arith.constant 0 : index
    %15 = vector.load %arg5[%c0_8, %c0_9, %c0_10] : memref<1x256x255xbf16, #tpu.memory_space<vmem>>, vector<1x256x255xbf16>
    %16 = vector.shape_cast %15 : vector<1x256x255xbf16> to vector<256x255xbf16>
    %17 = vector.shape_cast %14 : vector<256x255xbf16> to vector<1x256x255xbf16>
    tpu.vector_store %arg5[%c0_8, %c0_9, %c0_10], %17 {strides = array<i32>} : memref<1x256x255xbf16, #tpu.memory_space<vmem>>, vector<1x256x255xbf16>,
    return
  }
  func.func @transform_0(%arg0: i32, %arg1: i32) -> (i32, i32, i32) {
    %c0_i32 = arith.constant 0 : i32
    %c0_i32_0 = arith.constant 0 : i32
    return %arg0, %c0_i32, %arg1 : i32, i32, i32
  }
  func.func @transform_1(%arg0: i32, %arg1: i32) -> (i32, i32) {
    %c0_i32 = arith.constant 0 : i32
    %c0_i32_0 = arith.constant 0 : i32
    %c0_i32_1 = arith.constant 0 : i32
    return %c0_i32, %c0_i32_0 : i32, i32
  }
  func.func @transform_2(%arg0: i32, %arg1: i32) -> (i32, i32) {
    %c0_i32 = arith.constant 0 : i32
    %c0_i32_0 = arith.constant 0 : i32
    %c0_i32_1 = arith.constant 0 : i32
    return %c0_i32, %c0_i32_0 : i32, i32
  }
  func.func @transform_3(%arg0: i32, %arg1: i32) -> (i32, i32, i32) {
    %c0_i32 = arith.constant 0 : i32
    %c0_i32_0 = arith.constant 0 : i32
    return %arg0, %arg1, %c0_i32 : i32, i32, i32
  }
}

</mosaic_0001>

<llo_original>
// kernel: tpu_custom_call.1
$region0: #{tpu_custom_call.1}
  #allocation0 [shape = 'u32[]', space=smem, size = 0x4, offset = 0x4, fixed_abs, tag = 'smem constant byte address 0x4 - core index']
  #allocation1 [shape = 'u32[144,128]{1,0:T(1,128)}', space=vmem, size = 0x12000, scoped, tag = 'internal scratch']
  %s0 = inlined_call_operand.hbm [shape: f32[2,32,256], index: 0, kind: input, shape index: {}]
  %s1 = inlined_call_operand.hbm [shape: bf16[32,255], index: 1, kind: input, shape index: {}]
  %s2 = inlined_call_operand.vmem [shape: f32[1,255], index: 2, kind: input, shape index: {}]
  %s3 = inlined_call_operand.vmem [shape: bf16[2,256,255], index: 3, kind: output, shape index: {}]
  %s4 = sld [smem:[#allocation0]]
  $region53: #{tpu_custom_call.1} parent=0
    _
  %s6 = ssub.s32 1, %s4
  %s7 = scalar_select 0, %s6, %s4
  $region1: #{tpu_custom_call.1} parent=0
    #allocation2 [shape = 'u8[65536]{0}', space=vmem, size = 0x10000, scoped, tag = 'input window, operand 0']
    #allocation3 [shape = 's32[2]{0}', space=sflag, size = 0x8, scoped, tag = 'scoped memory for tpu_custom_call.1']
    #allocation4 [shape = 'u8[16384]{0}', space=vmem, size = 0x4000, scoped, tag = 'input window, operand 1, single buffered']
    #allocation5 [shape = 's32[1]{0}', space=sflag, size = 0x4, scoped, tag = 'scoped memory for tpu_custom_call.1']
    %8 = vsyncpa [#allocation3], 0
    %s9 = scalar_lea.sflag [#allocation3], 1
    %10 = vsyncpa %s9, 0
    %11 = vsyncpa [#allocation5], 0
    loop: start=0, step=1, limit=4
    $region2: #{tpu_custom_call.1} parent=1 // loop_pre_header
      _
    $region3: #{tpu_custom_call.1} parent=1 // loop_header
      %s13 = sphi 0, %s17
      %p14 = scmp.ge.s32.totalorder %s13, 4
      %s20 = sphi 0, %s32
      %s21 = sphi 0, %s28
      %s22 = sphi 0, %s20
      %s23 = sphi 0, %s21
      %s24 = sphi 0, %s22
      %s25 = sphi 0, %s23
      %s37 = sphi 0, %s39
      %s40 = sphi 0, %s37
      %s41 = sphi 0, %s40
      %s57 = sphi 0, %s41
      %s61 = sphi 0, %s61
      %s63 = sphi 0, %s61
      %s64 = sphi 0, %s63
      %s78 = sphi 0, %s64
      %s82 = sphi 0, %s82
      %s84 = sphi 0, %s82
      %s85 = sphi 0, %s84
      %s99 = sphi 0, %s85
      %s107 = sphi 0, %s109
      %s110 = sphi 0, %s107
      %s111 = sphi 0, %s110
      %s127 = sphi 0, %s111
    $region4: #{tpu_custom_call.1} parent=1 // loop_header_branch
      %16 = sbr.rel (%p14) target = $region8
    $region5: #{tpu_custom_call.1} parent=1 // loop_body
      %s18 = ssub.s32 %s13, 1
      %s19 = ssub.s32 %s13, 2
      %s26 = sadd.s32 1, %s21
      %p27 = scmp.ge.s32.totalorder %s26, 1
      %s28 = scalar_select %p27, 0, %s26
      %s29 = sadd.s32 1, %s20
      %s30 = scalar_select %p27, %s29, %s20
      %p31 = scmp.ge.s32.totalorder %s30, 2
      %s32 = scalar_select %p31, 0, %s30
      %s33 = ssub.s32 %s20, %s32
      %s34 = ssub.s32 %s21, %s28
      %s35 = sor.u32 %s33, %s34
      %p36 = scmp.eq.s32.totalorder %s35, 0
      %s38 = sadd.s32 %s37, 1
      %s39 = scalar_select %p36, %s37, %s38
      %p42 = pneg %p36
      %p43 = scmp.eq.s32.totalorder %s13, 1
      %p44 = por %p42, %p43
      %p45 = scmp.ne.s32.totalorder %s37, %s40
      %p46 = scmp.eq.s32.totalorder %s13, 0
      %p47 = por %p45, %p46
      %p48 = scmp.ne.s32.totalorder %s37, %s40
      %p49 = scmp.eq.s32.totalorder %s18, 1
      %p50 = por %p48, %p49
      %p51 = scmp.ne.s32.totalorder %s40, %s41
      %p52 = scmp.eq.s32.totalorder %s18, 0
      %p53 = por %p51, %p52
      %p54 = scmp.ne.s32.totalorder %s40, %s41
      %p55 = scmp.eq.s32.totalorder %s19, 1
      %p56 = por %p54, %p55
      %p58 = scmp.ne.s32.totalorder %s41, %s57
      %p59 = scmp.eq.s32.totalorder %s19, 0
      %p60 = por %p58, %p59
      %s62 = sadd.s32 %s61, 1
      %p65 = scmp.eq.s32.totalorder %s13, 1
      %p66 = scmp.ne.s32.totalorder %s61, %s63
      %p67 = scmp.eq.s32.totalorder %s13, 0
      %p68 = por %p66, %p67
      %p69 = scmp.ne.s32.totalorder %s61, %s63
      %p70 = scmp.eq.s32.totalorder %s18, 1
      %p71 = por %p69, %p70
      %p72 = scmp.ne.s32.totalorder %s63, %s64
      %p73 = scmp.eq.s32.totalorder %s18, 0
      %p74 = por %p72, %p73
      %p75 = scmp.ne.s32.totalorder %s63, %s64
      %p76 = scmp.eq.s32.totalorder %s19, 1
      %p77 = por %p75, %p76
      %p79 = scmp.ne.s32.totalorder %s64, %s78
      %p80 = scmp.eq.s32.totalorder %s19, 0
      %p81 = por %p79, %p80
      %s83 = sadd.s32 %s82, 1
      %p86 = scmp.eq.s32.totalorder %s13, 1
      %p87 = scmp.ne.s32.totalorder %s82, %s84
      %p88 = scmp.eq.s32.totalorder %s13, 0
      %p89 = por %p87, %p88
      %p90 = scmp.ne.s32.totalorder %s82, %s84
      %p91 = scmp.eq.s32.totalorder %s18, 1
      %p92 = por %p90, %p91
      %p93 = scmp.ne.s32.totalorder %s84, %s85
      %p94 = scmp.eq.s32.totalorder %s18, 0
      %p95 = por %p93, %p94
      %p96 = scmp.ne.s32.totalorder %s84, %s85
      %p97 = scmp.eq.s32.totalorder %s19, 1
      %p98 = por %p96, %p97
      %p100 = scmp.ne.s32.totalorder %s85, %s99
      %p101 = scmp.eq.s32.totalorder %s19, 0
      %p102 = por %p100, %p101
      %s103 = ssub.s32 %s20, %s32
      %s104 = ssub.s32 %s21, %s28
      %s105 = sor.u32 %s103, %s104
      %p106 = scmp.eq.s32.totalorder %s105, 0
      %s108 = sadd.s32 %s107, 1
      %s109 = scalar_select %p106, %s107, %s108
      %p112 = pneg %p106
      %p113 = scmp.eq.s32.totalorder %s13, 1
      %p114 = por %p112, %p113
      %p115 = scmp.ne.s32.totalorder %s107, %s110
      %p116 = scmp.eq.s32.totalorder %s13, 0
      %p117 = por %p115, %p116
      %p118 = scmp.ne.s32.totalorder %s107, %s110
      %p119 = scmp.eq.s32.totalorder %s18, 1
      %p120 = por %p118, %p119
      %p121 = scmp.ne.s32.totalorder %s110, %s111
      %p122 = scmp.eq.s32.totalorder %s18, 0
      %p123 = por %p121, %p122
      %p124 = scmp.ne.s32.totalorder %s110, %s111
      %p125 = scmp.eq.s32.totalorder %s19, 1
      %p126 = por %p124, %p125
      %p128 = scmp.ne.s32.totalorder %s111, %s127
      %p129 = scmp.eq.s32.totalorder %s19, 0
      %p130 = por %p128, %p129
      %p131 = scmp.le.s32.totalorder 1, %s13
      %p132 = scmp.lt.s32.totalorder %s13, 3
      %p133 = pnand %p131, %p132
      %p134 = pneg %p133
      // Predicated region
      $region9: #{tpu_custom_call.1} parent=5 // pred_check
        _
      $region10: #{tpu_custom_call.1} parent=5 // pred_check_branch
        %136 = sbr.rel (%p133) target = $region12
      $region11: #{tpu_custom_call.1} parent=5 // pred_region
        %s137 = ssub.s32 %s13, 1
        // Predicated region
        $region13: #{tpu_custom_call.1} parent=11 // pred_check
          %p138 = pneg %p74
        $region14: #{tpu_custom_call.1} parent=11 // pred_check_branch
          %140 = sbr.rel (%p138) target = $region16
        $region15: #{tpu_custom_call.1} parent=11 // pred_region
          %s142 = ssub.s32 512, 512
          %143 = vsyncadd [#allocation5], %s142
          %s144 = sshll.u32 [#allocation4], 4
          %s145 = int_to_ptr.vmem [resolvable:$true] %s144
          %150 = dma.hbm_to_vmem [thread:$0]  %s1, 512, %s145, [#allocation5], 128, 128, 8
        $region16: #{tpu_custom_call.1} parent=11 // pred_fallthru
          _
        // Predicated region
        $region17: #{tpu_custom_call.1} parent=11 // pred_check
          %p151 = pneg %p95
        $region18: #{tpu_custom_call.1} parent=11 // pred_check_branch
          %153 = sbr.rel (%p151) target = $region20
        $region19: #{tpu_custom_call.1} parent=11 // pred_region
          _
        $region20: #{tpu_custom_call.1} parent=11 // pred_fallthru
          _
      $region12: #{tpu_custom_call.1} parent=5 // pred_fallthru
        _
      %p154 = scmp.lt.s32.totalorder %s13, 2
      // Predicated region
      $region21: #{tpu_custom_call.1} parent=5 // pred_check
        %p155 = pneg %p154
      $region22: #{tpu_custom_call.1} parent=5 // pred_check_branch
        %157 = sbr.rel (%p155) target = $region24
      $region23: #{tpu_custom_call.1} parent=5 // pred_region
        // Predicated region
        $region25: #{tpu_custom_call.1} parent=23 // pred_check
          %p158 = pneg %p47
        $region26: #{tpu_custom_call.1} parent=23 // pred_check_branch
          %160 = sbr.rel (%p158) target = $region28
        $region27: #{tpu_custom_call.1} parent=23 // pred_region
          %s161 = sand.u32 %s37, 1
          %s162 = scalar_lea.sflag [#allocation3], %s161
          %s163 = sand.u32 %s37, 1
          %s164 = smul.addr %s163, 64
          %s165 = scalar_lea.vmem [#allocation2], %s164
          %s166 = smul.u32 2, %s21
          %s168 = ssub.s32 1024, 1024
          %169 = vsyncadd %s162, %s168
          %s170 = smul.addr %s20, 8
          %s171 = sadd.s32 %s166, %s170
          %s172 = smul.addr %s171, 128
          %s173 = scalar_lea.hbm %s0, %s172
          %s174 = sshll.u32 %s165, 4
          %s175 = int_to_ptr.vmem [resolvable:$true] %s174
          %180 = dma.hbm_to_vmem [thread:$0]  %s173, 1024, %s175, %s162, 256, 256, 16
        $region28: #{tpu_custom_call.1} parent=23 // pred_fallthru
          _
      $region24: #{tpu_custom_call.1} parent=5 // pred_fallthru
        _
      %p181 = scmp.le.s32.totalorder 1, %s13
      %p182 = scmp.lt.s32.totalorder %s13, 3
      %p183 = pnand %p181, %p182
      %p184 = pneg %p183
      // Predicated region
      $region29: #{tpu_custom_call.1} parent=5 // pred_check
        _
      $region30: #{tpu_custom_call.1} parent=5 // pred_check_branch
        %186 = sbr.rel (%p183) target = $region32
      $region31: #{tpu_custom_call.1} parent=5 // pred_region
        %s187 = ssub.s32 %s13, 1
        %s188 = sand.u32 %s40, 1
        %s189 = scalar_lea.sflag [#allocation3], %s188
        %s190 = sand.u32 %s40, 1
        %s191 = smul.addr %s190, 64
        %s192 = scalar_lea.vmem [#allocation2], %s191
        // Predicated region
        $region33: #{tpu_custom_call.1} parent=31 // pred_check
          %p193 = pneg %p53
        $region34: #{tpu_custom_call.1} parent=31 // pred_check_branch
          %195 = sbr.rel (%p193) target = $region36
        $region35: #{tpu_custom_call.1} parent=31 // pred_region
          %196 = dma.done %s189, 1024
        $region36: #{tpu_custom_call.1} parent=31 // pred_fallthru
          _
        // Predicated region
        $region37: #{tpu_custom_call.1} parent=31 // pred_check
          %p197 = pneg %p74
        $region38: #{tpu_custom_call.1} parent=31 // pred_check_branch
          %199 = sbr.rel (%p197) target = $region40
        $region39: #{tpu_custom_call.1} parent=31 // pred_region
          %200 = dma.done [#allocation5], 512
        $region40: #{tpu_custom_call.1} parent=31 // pred_fallthru
          _
        %s201 = sand.u32 %s40, 1
        %s202 = scalar_lea.sflag [#allocation3], %s201
        %s203 = sand.u32 %s40, 1
        %s204 = smul.addr %s203, 64
        %s205 = scalar_lea.vmem [#allocation2], %s204
        %p206 = pneg %p53
        %p207 = pneg %p50
        %p208 = pneg %p74
        %p209 = pneg %p71
        %p210 = pneg %p95
        %p211 = pneg %p92
        %p212 = pneg %p123
        %p213 = pneg %p120
        %s214 = smul.u32 32, %s23
        %p215 = scmp.lt.s32.totalorder %s22, 1
        %s216 = scalar_select %p215, %s22, 1
        %p217 = scmp.lt.s32.totalorder %s214, 31
        %s218 = scalar_select %p217, %s214, 31
        %s219 = smul.addr %s218, 2
        %s220 = smul.addr %s216, 64
        %s221 = sadd.s32 %s219, %s220
        %s222 = smul.addr %s221, 4
        %s223 = scalar_lea.vmem %s3, %s222
        %s224 = smul.u32 2, %s23
        %s225 = smul.u32 32, %s23
        %p226 = scmp.lt.s32.totalorder %s22, 1
        %s227 = scalar_select %p226, %s22, 1
        %p228 = scmp.lt.s32.totalorder %s225, 31
        %s229 = scalar_select %p228, %s225, 31
        %s230 = smul.addr %s229, 2
        %s231 = smul.addr %s227, 64
        %s232 = sadd.s32 %s230, %s231
        %s233 = smul.addr %s232, 4
        %s234 = scalar_lea.vmem %s3, %s233
        %s235 = smul.u32 32, %s23
        %v237 = vld [vmem:[%s192] sm:$0xff]
        %v238 = vld [vmem:[%s192 + $0x8] sm:$0xff]
        %v239 = vld [vmem:[%s192 + $0x10] sm:$0xff]
        %v240 = vld [vmem:[%s192 + $0x18] sm:$0xff]
        %v241 = vld [vmem:[%s192 + $0x20] sm:$0xff]
        %v242 = vld [vmem:[%s192 + $0x28] sm:$0xff]
        %v243 = vld [vmem:[%s192 + $0x30] sm:$0xff]
        %v244 = vld [vmem:[%s192 + $0x38] sm:$0xff]
        %v245 = vpack.c.bf16 %v239, %v237
        %v246 = vpack.c.bf16 %v240, %v238
        %v247 = vpack.c.bf16 %v243, %v241
        %v248 = vpack.c.bf16 %v244, %v242
        %v249 = vld [vmem:[#allocation4] sm:$0xff]
        %v250 = vld [vmem:[#allocation4 + $0x8] sm:$0xff]
        %v251 = vld [vmem:[#allocation4 + $0x10] sm:$0xff]
        %v252 = vld [vmem:[#allocation4 + $0x18] sm:$0xff]
        %v253 = vld [vmem:[%s2] sm:$0x3]
        %v255 = vlaneseq
        %v256 = vshrl.u32 %v255, 7
        %v257 = vsub.s32 0, %v256
        %v258 = vrot.slane %v253, %v257
        %v259 = vlaneseq
        %v260 = vshrl.u32 %v259, 7
        %v261 = vsub.s32 1, %v260
        %v262 = vrot.slane %v253, %v261
        %265 = vxpose.xlu0.c.b16.start [1/8] %v245, 128
        %266 = vxpose.xlu0.c.b16.cont [2/8] %v247, 128
        %267 = vxpose.xlu0.c.b16.cont [3/8] 0, 128
        %268 = vxpose.xlu0.c.b16.cont [4/8] 0, 128
        %269 = vxpose.xlu0.c.b16.cont [5/8] 0, 128
        %270 = vxpose.xlu0.c.b16.cont [6/8] 0, 128
        %271 = vxpose.xlu0.c.b16.cont [7/8] 0, 128
        %272 = vxpose.xlu0.c.b16.end [8/8] 0, 128
        %v273 = vpop.trf.xlu0
        %v274 = vpop.trf.xlu0
        %v275 = vpop.trf.xlu0
        %v276 = vpop.trf.xlu0
        %v277 = vpop.trf.xlu0
        %v278 = vpop.trf.xlu0
        %v279 = vpop.trf.xlu0
        %v280 = vpop.trf.xlu0
        %281 = vxpose.xlu0.c.b16.start [1/8] %v246, 128
        %282 = vxpose.xlu0.c.b16.cont [2/8] %v248, 128
        %283 = vxpose.xlu0.c.b16.cont [3/8] 0, 128
        %284 = vxpose.xlu0.c.b16.cont [4/8] 0, 128
        %285 = vxpose.xlu0.c.b16.cont [5/8] 0, 128
        %286 = vxpose.xlu0.c.b16.cont [6/8] 0, 128
        %287 = vxpose.xlu0.c.b16.cont [7/8] 0, 128
        %288 = vxpose.xlu0.c.b16.end [8/8] 0, 128
        %v289 = vpop.trf.xlu0
        %v290 = vpop.trf.xlu0
        %v291 = vpop.trf.xlu0
        %v292 = vpop.trf.xlu0
        %v293 = vpop.trf.xlu0
        %v294 = vpop.trf.xlu0
        %v295 = vpop.trf.xlu0
        %v296 = vpop.trf.xlu0
        %v301 = vunpack.c.l.b16 %v249
        %v302 = vunpack.c.h.b16 %v249
        %v303 = vunpack.c.l.b16 %v250
        %v304 = vunpack.c.h.b16 %v250
        %v305 = vunpack.c.l.b16 %v251
        %v306 = vunpack.c.h.b16 %v251
        %v307 = vunpack.c.l.b16 %v252
        %v308 = vunpack.c.h.b16 %v252
        %v309 = vpack.c.b16 %v303, %v301
        %v310 = vpack.c.b16 %v304, %v302
        %v311 = vpack.c.b16 %v307, %v305
        %v312 = vpack.c.b16 %v308, %v306
        %vm317 = vcmask 261120
        %v319 = vsel %vm317, %v273, 0
        %v322 = vsel %vm317, %v274, 0
        %v325 = vsel %vm317, %v275, 0
        %v328 = vsel %vm317, %v276, 0
        %v331 = vsel %vm317, %v277, 0
        %v334 = vsel %vm317, %v278, 0
        %v337 = vsel %vm317, %v279, 0
        %v340 = vsel %vm317, %v280, 0
        %v343 = vsel %vm317, %v289, 0
        %v346 = vsel %vm317, %v290, 0
        %v349 = vsel %vm317, %v291, 0
        %v352 = vsel %vm317, %v292, 0
        %v355 = vsel %vm317, %v293, 0
        %v358 = vsel %vm317, %v294, 0
        %v361 = vsel %vm317, %v295, 0
        %v364 = vsel %vm317, %v296, 0
        %366 = vmatprep.subr.bf16.mxu0 %v310
        %367 = vmatpush1.bf16.msra.mxu0 %v309
        %368 = vmatprep.subr.bf16.mxu0 %v312
        %369 = vmatpush1.bf16.msra.mxu0 %v311
        %370 = vmatprep.subr.bf16.mxu0 0
        %371 = vmatpush1.bf16.msra.mxu0 0
        %372 = vmatprep.subr.bf16.mxu0 0
        %373 = vmatpush1.bf16.msra.mxu0 0
        %374 = vmatprep.subr.bf16.mxu0 0
        %375 = vmatpush1.bf16.msra.mxu0 0
        %376 = vmatprep.subr.bf16.mxu0 0
        %377 = vmatpush1.bf16.msra.mxu0 0
        %378 = vmatprep.subr.bf16.mxu0 0
        %379 = vmatpush1.bf16.msra.mxu0 0
        %380 = vmatprep.subr.bf16.mxu0 0
        %381 = vmatpush1.bf16.msra.mxu0 0
        %382 = vmatprep.subr.bf16.mxu0 0
        %383 = vmatpush1.bf16.msra.mxu0 0
        %384 = vmatprep.subr.bf16.mxu0 0
        %385 = vmatpush1.bf16.msra.mxu0 0
        %386 = vmatprep.subr.bf16.mxu0 0
        %387 = vmatpush1.bf16.msra.mxu0 0
        %388 = vmatprep.subr.bf16.mxu0 0
        %389 = vmatpush1.bf16.msra.mxu0 0
        %390 = vmatprep.subr.bf16.mxu0 0
        %391 = vmatpush1.bf16.msra.mxu0 0
        %392 = vmatprep.subr.bf16.mxu0 0
        %393 = vmatpush1.bf16.msra.mxu0 0
        %394 = vmatprep.subr.bf16.mxu0 0
        %395 = vmatpush1.bf16.msra.mxu0 0
        %396 = vmatprep.subr.bf16.mxu0 0
        %397 = vmatpush1.bf16.msra.mxu0 0
        %398 = vmatprep.mubr.bf16.mxu0 0
        %399 = vmatmul.mubr.bf16.gmra.mrb[0].mxu0 %v319
        %v400 = vpop.f32.mrb[0].mxu0
        %v401 = vadd.f32 %v258, %v400
        %v402 = vpop.f32.mrb[0].mxu0
        %v403 = vadd.f32 %v262, %v402
        %v404 = vpop.f32.mrb[0].mxu0
        %v405 = vadd.f32 %v258, %v404
        %v406 = vpop.f32.mrb[0].mxu0
        %v407 = vadd.f32 %v262, %v406
        %408 = vmatprep.mubr.bf16.mxu0 0
        %409 = vmatmul.mubr.bf16.gmra.mrb[0].mxu0 %v322
        %v410 = vpop.f32.mrb[0].mxu0
        %v411 = vadd.f32 %v258, %v410
        %v412 = vpop.f32.mrb[0].mxu0
        %v413 = vadd.f32 %v262, %v412
        %v414 = vpop.f32.mrb[0].mxu0
        %v415 = vadd.f32 %v258, %v414
        %v416 = vpop.f32.mrb[0].mxu0
        %v417 = vadd.f32 %v262, %v416
        %418 = vmatprep.mubr.bf16.mxu0 0
        %419 = vmatmul.mubr.bf16.gmra.mrb[0].mxu0 %v325
        %v420 = vpop.f32.mrb[0].mxu0
        %v421 = vadd.f32 %v258, %v420
        %v422 = vpop.f32.mrb[0].mxu0
        %v423 = vadd.f32 %v262, %v422
        %v424 = vpop.f32.mrb[0].mxu0
        %v425 = vadd.f32 %v258, %v424
        %v426 = vpop.f32.mrb[0].mxu0
        %v427 = vadd.f32 %v262, %v426
        %428 = vmatprep.mubr.bf16.mxu0 0
        %429 = vmatmul.mubr.bf16.gmra.mrb[0].mxu0 %v328
        %v430 = vpop.f32.mrb[0].mxu0
        %v431 = vadd.f32 %v258, %v430
        %v432 = vpop.f32.mrb[0].mxu0
        %v433 = vadd.f32 %v262, %v432
        %v434 = vpop.f32.mrb[0].mxu0
        %v435 = vadd.f32 %v258, %v434
        %v436 = vpop.f32.mrb[0].mxu0
        %v437 = vadd.f32 %v262, %v436
        %438 = vmatprep.mubr.bf16.mxu0 0
        %439 = vmatmul.mubr.bf16.gmra.mrb[0].mxu0 %v331
        %v440 = vpop.f32.mrb[0].mxu0
        %v441 = vadd.f32 %v258, %v440
        %v442 = vpop.f32.mrb[0].mxu0
        %v443 = vadd.f32 %v262, %v442
        %v444 = vpop.f32.mrb[0].mxu0
        %v445 = vadd.f32 %v258, %v444
        %v446 = vpop.f32.mrb[0].mxu0
        %v447 = vadd.f32 %v262, %v446
        %448 = vmatprep.mubr.bf16.mxu0 0
        %449 = vmatmul.mubr.bf16.gmra.mrb[0].mxu0 %v334
        %v450 = vpop.f32.mrb[0].mxu0
        %v451 = vadd.f32 %v258, %v450
        %v452 = vpop.f32.mrb[0].mxu0
        %v453 = vadd.f32 %v262, %v452
        %v454 = vpop.f32.mrb[0].mxu0
        %v455 = vadd.f32 %v258, %v454
        %v456 = vpop.f32.mrb[0].mxu0
        %v457 = vadd.f32 %v262, %v456
        %458 = vmatprep.mubr.bf16.mxu0 0
        %459 = vmatmul.mubr.bf16.gmra.mrb[0].mxu0 %v337
        %v460 = vpop.f32.mrb[0].mxu0
        %v461 = vadd.f32 %v258, %v460
        %v462 = vpop.f32.mrb[0].mxu0
        %v463 = vadd.f32 %v262, %v462
        %v464 = vpop.f32.mrb[0].mxu0
        %v465 = vadd.f32 %v258, %v464
        %v466 = vpop.f32.mrb[0].mxu0
        %v467 = vadd.f32 %v262, %v466
        %468 = vmatprep.mubr.bf16.mxu0 0
        %469 = vmatmul.mubr.bf16.gmra.mrb[0].mxu0 %v340
        %v470 = vpop.f32.mrb[0].mxu0
        %v471 = vadd.f32 %v258, %v470
        %v472 = vpop.f32.mrb[0].mxu0
        %v473 = vadd.f32 %v262, %v472
        %v474 = vpop.f32.mrb[0].mxu0
        %v475 = vadd.f32 %v258, %v474
        %v476 = vpop.f32.mrb[0].mxu0
        %v477 = vadd.f32 %v262, %v476
        %478 = vmatprep.mubr.bf16.mxu0 0
        %479 = vmatmul.mubr.bf16.gmra.mrb[0].mxu0 %v343
        %v480 = vpop.f32.mrb[0].mxu0
        %v481 = vadd.f32 %v258, %v480
        %v482 = vpop.f32.mrb[0].mxu0
        %v483 = vadd.f32 %v262, %v482
        %v484 = vpop.f32.mrb[0].mxu0
        %v485 = vadd.f32 %v258, %v484
        %v486 = vpop.f32.mrb[0].mxu0
        %v487 = vadd.f32 %v262, %v486
        %488 = vmatprep.mubr.bf16.mxu0 0
        %489 = vmatmul.mubr.bf16.gmra.mrb[0].mxu0 %v346
        %v490 = vpop.f32.mrb[0].mxu0
        %v491 = vadd.f32 %v258, %v490
        %v492 = vpop.f32.mrb[0].mxu0
        %v493 = vadd.f32 %v262, %v492
        %v494 = vpop.f32.mrb[0].mxu0
        %v495 = vadd.f32 %v258, %v494
        %v496 = vpop.f32.mrb[0].mxu0
        %v497 = vadd.f32 %v262, %v496
        %498 = vmatprep.mubr.bf16.mxu0 0
        %499 = vmatmul.mubr.bf16.gmra.mrb[0].mxu0 %v349
        %v500 = vpop.f32.mrb[0].mxu0
        %v501 = vadd.f32 %v258, %v500
        %v502 = vpop.f32.mrb[0].mxu0
        %v503 = vadd.f32 %v262, %v502
        %v504 = vpop.f32.mrb[0].mxu0
        %v505 = vadd.f32 %v258, %v504
        %v506 = vpop.f32.mrb[0].mxu0
        %v507 = vadd.f32 %v262, %v506
        %508 = vmatprep.mubr.bf16.mxu0 0
        %509 = vmatmul.mubr.bf16.gmra.mrb[0].mxu0 %v352
        %v510 = vpop.f32.mrb[0].mxu0
        %v511 = vadd.f32 %v258, %v510
        %v512 = vpop.f32.mrb[0].mxu0
        %v513 = vadd.f32 %v262, %v512
        %v514 = vpop.f32.mrb[0].mxu0
        %v515 = vadd.f32 %v258, %v514
        %v516 = vpop.f32.mrb[0].mxu0
        %v517 = vadd.f32 %v262, %v516
        %518 = vmatprep.mubr.bf16.mxu0 0
        %519 = vmatmul.mubr.bf16.gmra.mrb[0].mxu0 %v355
        %v520 = vpop.f32.mrb[0].mxu0
        %v521 = vadd.f32 %v258, %v520
        %v522 = vpop.f32.mrb[0].mxu0
        %v523 = vadd.f32 %v262, %v522
        %v524 = vpop.f32.mrb[0].mxu0
        %v525 = vadd.f32 %v258, %v524
        %v526 = vpop.f32.mrb[0].mxu0
        %v527 = vadd.f32 %v262, %v526
        %528 = vmatprep.mubr.bf16.mxu0 0
        %529 = vmatmul.mubr.bf16.gmra.mrb[0].mxu0 %v358
        %v530 = vpop.f32.mrb[0].mxu0
        %v531 = vadd.f32 %v258, %v530
        %v532 = vpop.f32.mrb[0].mxu0
        %v533 = vadd.f32 %v262, %v532
        %v534 = vpop.f32.mrb[0].mxu0
        %v535 = vadd.f32 %v258, %v534
        %v536 = vpop.f32.mrb[0].mxu0
        %v537 = vadd.f32 %v262, %v536
        %538 = vmatprep.mubr.bf16.mxu0 0
        %539 = vmatmul.mubr.bf16.gmra.mrb[0].mxu0 %v361
        %v540 = vpop.f32.mrb[0].mxu0
        %v541 = vadd.f32 %v258, %v540
        %v542 = vpop.f32.mrb[0].mxu0
        %v543 = vadd.f32 %v262, %v542
        %v544 = vpop.f32.mrb[0].mxu0
        %v545 = vadd.f32 %v258, %v544
        %v546 = vpop.f32.mrb[0].mxu0
        %v547 = vadd.f32 %v262, %v546
        %548 = vmatprep.mubr.bf16.mxu0 0
        %549 = vmatmul.mubr.bf16.gmra.mrb[0].mxu0 %v364
        %v550 = vpop.f32.mrb[0].mxu0
        %v551 = vadd.f32 %v258, %v550
        %v552 = vpop.f32.mrb[0].mxu0
        %v553 = vadd.f32 %v262, %v552
        %v554 = vpop.f32.mrb[0].mxu0
        %v555 = vadd.f32 %v258, %v554
        %v556 = vpop.f32.mrb[0].mxu0
        %v557 = vadd.f32 %v262, %v556
        %558 = vdwg.mxu0
        %v559 = vsub.f32 0.0, %v401
        %v560 = vsub.f32 0.0, %v403
        %v561 = vsub.f32 0.0, %v405
        %v562 = vsub.f32 0.0, %v407
        %v563 = vsub.f32 0.0, %v411
        %v564 = vsub.f32 0.0, %v413
        %v565 = vsub.f32 0.0, %v415
        %v566 = vsub.f32 0.0, %v417
        %v567 = vsub.f32 0.0, %v421
        %v568 = vsub.f32 0.0, %v423
        %v569 = vsub.f32 0.0, %v425
        %v570 = vsub.f32 0.0, %v427
        %v571 = vsub.f32 0.0, %v431
        %v572 = vsub.f32 0.0, %v433
        %v573 = vsub.f32 0.0, %v435
        %v574 = vsub.f32 0.0, %v437
        %v575 = vsub.f32 0.0, %v441
        %v576 = vsub.f32 0.0, %v443
        %v577 = vsub.f32 0.0, %v445
        %v578 = vsub.f32 0.0, %v447
        %v579 = vsub.f32 0.0, %v451
        %v580 = vsub.f32 0.0, %v453
        %v581 = vsub.f32 0.0, %v455
        %v582 = vsub.f32 0.0, %v457
        %v583 = vsub.f32 0.0, %v461
        %v584 = vsub.f32 0.0, %v463
        %v585 = vsub.f32 0.0, %v465
        %v586 = vsub.f32 0.0, %v467
        %v587 = vsub.f32 0.0, %v471
        %v588 = vsub.f32 0.0, %v473
        %v589 = vsub.f32 0.0, %v475
        %v590 = vsub.f32 0.0, %v477
        %v591 = vsub.f32 0.0, %v481
        %v592 = vsub.f32 0.0, %v483
        %v593 = vsub.f32 0.0, %v485
        %v594 = vsub.f32 0.0, %v487
        %v595 = vsub.f32 0.0, %v491
        %v596 = vsub.f32 0.0, %v493
        %v597 = vsub.f32 0.0, %v495
        %v598 = vsub.f32 0.0, %v497
        %v599 = vsub.f32 0.0, %v501
        %v600 = vsub.f32 0.0, %v503
        %v601 = vsub.f32 0.0, %v505
        %v602 = vsub.f32 0.0, %v507
        %v603 = vsub.f32 0.0, %v511
        %v604 = vsub.f32 0.0, %v513
        %v605 = vsub.f32 0.0, %v515
        %v606 = vsub.f32 0.0, %v517
        %v607 = vsub.f32 0.0, %v521
        %v608 = vsub.f32 0.0, %v523
        %v609 = vsub.f32 0.0, %v525
        %v610 = vsub.f32 0.0, %v527
        %v611 = vsub.f32 0.0, %v531
        %v612 = vsub.f32 0.0, %v533
        %v613 = vsub.f32 0.0, %v535
        %v614 = vsub.f32 0.0, %v537
        %v615 = vsub.f32 0.0, %v541
        %v616 = vsub.f32 0.0, %v543
        %v617 = vsub.f32 0.0, %v545
        %v618 = vsub.f32 0.0, %v547
        %v619 = vsub.f32 0.0, %v551
        %v620 = vsub.f32 0.0, %v553
        %v621 = vsub.f32 0.0, %v555
        %v622 = vsub.f32 0.0, %v557
        %v623 = vmul.f32 %v559, 1.442695
        %v624 = vpow.pop %v623
        %v625 = vmul.f32 %v560, 1.442695
        %v626 = vpow.pop %v625
        %v627 = vmul.f32 %v561, 1.442695
        %v628 = vpow.pop %v627
        %v629 = vmul.f32 %v562, 1.442695
        %v630 = vpow.pop %v629
        %v631 = vmul.f32 %v563, 1.442695
        %v632 = vpow.pop %v631
        %v633 = vmul.f32 %v564, 1.442695
        %v634 = vpow.pop %v633
        %v635 = vmul.f32 %v565, 1.442695
        %v636 = vpow.pop %v635
        %v637 = vmul.f32 %v566, 1.442695
        %v638 = vpow.pop %v637
        %v639 = vmul.f32 %v567, 1.442695
        %v640 = vpow.pop %v639
        %v641 = vmul.f32 %v568, 1.442695
        %v642 = vpow.pop %v641
        %v643 = vmul.f32 %v569, 1.442695
        %v644 = vpow.pop %v643
        %v645 = vmul.f32 %v570, 1.442695
        %v646 = vpow.pop %v645
        %v647 = vmul.f32 %v571, 1.442695
        %v648 = vpow.pop %v647
        %v649 = vmul.f32 %v572, 1.442695
        %v650 = vpow.pop %v649
        %v651 = vmul.f32 %v573, 1.442695
        %v652 = vpow.pop %v651
        %v653 = vmul.f32 %v574, 1.442695
        %v654 = vpow.pop %v653
        %v655 = vmul.f32 %v575, 1.442695
        %v656 = vpow.pop %v655
        %v657 = vmul.f32 %v576, 1.442695
        %v658 = vpow.pop %v657
        %v659 = vmul.f32 %v577, 1.442695
        %v660 = vpow.pop %v659
        %v661 = vmul.f32 %v578, 1.442695
        %v662 = vpow.pop %v661
        %v663 = vmul.f32 %v579, 1.442695
        %v664 = vpow.pop %v663
        %v665 = vmul.f32 %v580, 1.442695
        %v666 = vpow.pop %v665
        %v667 = vmul.f32 %v581, 1.442695
        %v668 = vpow.pop %v667
        %v669 = vmul.f32 %v582, 1.442695
        %v670 = vpow.pop %v669
        %v671 = vmul.f32 %v583, 1.442695
        %v672 = vpow.pop %v671
        %v673 = vmul.f32 %v584, 1.442695
        %v674 = vpow.pop %v673
        %v675 = vmul.f32 %v585, 1.442695
        %v676 = vpow.pop %v675
        %v677 = vmul.f32 %v586, 1.442695
        %v678 = vpow.pop %v677
        %v679 = vmul.f32 %v587, 1.442695
        %v680 = vpow.pop %v679
        %v681 = vmul.f32 %v588, 1.442695
        %v682 = vpow.pop %v681
        %v683 = vmul.f32 %v589, 1.442695
        %v684 = vpow.pop %v683
        %v685 = vmul.f32 %v590, 1.442695
        %v686 = vpow.pop %v685
        %v687 = vmul.f32 %v591, 1.442695
        %v688 = vpow.pop %v687
        %v689 = vmul.f32 %v592, 1.442695
        %v690 = vpow.pop %v689
        %v691 = vmul.f32 %v593, 1.442695
        %v692 = vpow.pop %v691
        %v693 = vmul.f32 %v594, 1.442695
        %v694 = vpow.pop %v693
        %v695 = vmul.f32 %v595, 1.442695
        %v696 = vpow.pop %v695
        %v697 = vmul.f32 %v596, 1.442695
        %v698 = vpow.pop %v697
        %v699 = vmul.f32 %v597, 1.442695
        %v700 = vpow.pop %v699
        %v701 = vmul.f32 %v598, 1.442695
        %v702 = vpow.pop %v701
        %v703 = vmul.f32 %v599, 1.442695
        %v704 = vpow.pop %v703
        %v705 = vmul.f32 %v600, 1.442695
        %v706 = vpow.pop %v705
        %v707 = vmul.f32 %v601, 1.442695
        %v708 = vpow.pop %v707
        %v709 = vmul.f32 %v602, 1.442695
        %v710 = vpow.pop %v709
        %v711 = vmul.f32 %v603, 1.442695
        %v712 = vpow.pop %v711
        %v713 = vmul.f32 %v604, 1.442695
        %v714 = vpow.pop %v713
        %v715 = vmul.f32 %v605, 1.442695
        %v716 = vpow.pop %v715
        %v717 = vmul.f32 %v606, 1.442695
        %v718 = vpow.pop %v717
        %v719 = vmul.f32 %v607, 1.442695
        %v720 = vpow.pop %v719
        %v721 = vmul.f32 %v608, 1.442695
        %v722 = vpow.pop %v721
        %v723 = vmul.f32 %v609, 1.442695
        %v724 = vpow.pop %v723
        %v725 = vmul.f32 %v610, 1.442695
        %v726 = vpow.pop %v725
        %v727 = vmul.f32 %v611, 1.442695
        %v728 = vpow.pop %v727
        %v729 = vmul.f32 %v612, 1.442695
        %v730 = vpow.pop %v729
        %v731 = vmul.f32 %v613, 1.442695
        %v732 = vpow.pop %v731
        %v733 = vmul.f32 %v614, 1.442695
        %v734 = vpow.pop %v733
        %v735 = vmul.f32 %v615, 1.442695
        %v736 = vpow.pop %v735
        %v737 = vmul.f32 %v616, 1.442695
        %v738 = vpow.pop %v737
        %v739 = vmul.f32 %v617, 1.442695
        %v740 = vpow.pop %v739
        %v741 = vmul.f32 %v618, 1.442695
        %v742 = vpow.pop %v741
        %v743 = vmul.f32 %v619, 1.442695
        %v744 = vpow.pop %v743
        %v745 = vmul.f32 %v620, 1.442695
        %v746 = vpow.pop %v745
        %v747 = vmul.f32 %v621, 1.442695
        %v748 = vpow.pop %v747
        %v749 = vmul.f32 %v622, 1.442695
        %v750 = vpow.pop %v749
        %v751 = vadd.f32 %v624, 1.0
        %v752 = vadd.f32 %v626, 1.0
        %v753 = vadd.f32 %v628, 1.0
        %v754 = vadd.f32 %v630, 1.0
        %v755 = vadd.f32 %v632, 1.0
        %v756 = vadd.f32 %v634, 1.0
        %v757 = vadd.f32 %v636, 1.0
        %v758 = vadd.f32 %v638, 1.0
        %v759 = vadd.f32 %v640, 1.0
        %v760 = vadd.f32 %v642, 1.0
        %v761 = vadd.f32 %v644, 1.0
        %v762 = vadd.f32 %v646, 1.0
        %v763 = vadd.f32 %v648, 1.0
        %v764 = vadd.f32 %v650, 1.0
        %v765 = vadd.f32 %v652, 1.0
        %v766 = vadd.f32 %v654, 1.0
        %v767 = vadd.f32 %v656, 1.0
        %v768 = vadd.f32 %v658, 1.0
        %v769 = vadd.f32 %v660, 1.0
        %v770 = vadd.f32 %v662, 1.0
        %v771 = vadd.f32 %v664, 1.0
        %v772 = vadd.f32 %v666, 1.0
        %v773 = vadd.f32 %v668, 1.0
        %v774 = vadd.f32 %v670, 1.0
        %v775 = vadd.f32 %v672, 1.0
        %v776 = vadd.f32 %v674, 1.0
        %v777 = vadd.f32 %v676, 1.0
        %v778 = vadd.f32 %v678, 1.0
        %v779 = vadd.f32 %v680, 1.0
        %v780 = vadd.f32 %v682, 1.0
        %v781 = vadd.f32 %v684, 1.0
        %v782 = vadd.f32 %v686, 1.0
        %v783 = vadd.f32 %v688, 1.0
        %v784 = vadd.f32 %v690, 1.0
        %v785 = vadd.f32 %v692, 1.0
        %v786 = vadd.f32 %v694, 1.0
        %v787 = vadd.f32 %v696, 1.0
        %v788 = vadd.f32 %v698, 1.0
        %v789 = vadd.f32 %v700, 1.0
        %v790 = vadd.f32 %v702, 1.0
        %v791 = vadd.f32 %v704, 1.0
        %v792 = vadd.f32 %v706, 1.0
        %v793 = vadd.f32 %v708, 1.0
        %v794 = vadd.f32 %v710, 1.0
        %v795 = vadd.f32 %v712, 1.0
        %v796 = vadd.f32 %v714, 1.0
        %v797 = vadd.f32 %v716, 1.0
        %v798 = vadd.f32 %v718, 1.0
        %v799 = vadd.f32 %v720, 1.0
        %v800 = vadd.f32 %v722, 1.0
        %v801 = vadd.f32 %v724, 1.0
        %v802 = vadd.f32 %v726, 1.0
        %v803 = vadd.f32 %v728, 1.0
        %v804 = vadd.f32 %v730, 1.0
        %v805 = vadd.f32 %v732, 1.0
        %v806 = vadd.f32 %v734, 1.0
        %v807 = vadd.f32 %v736, 1.0
        %v808 = vadd.f32 %v738, 1.0
        %v809 = vadd.f32 %v740, 1.0
        %v810 = vadd.f32 %v742, 1.0
        %v811 = vadd.f32 %v744, 1.0
        %v812 = vadd.f32 %v746, 1.0
        %v813 = vadd.f32 %v748, 1.0
        %v814 = vadd.f32 %v750, 1.0
        %v815 = vrcp.pop %v751
        %v816 = vrcp.pop %v752
        %v817 = vrcp.pop %v753
        %v818 = vrcp.pop %v754
        %v819 = vrcp.pop %v755
        %v820 = vrcp.pop %v756
        %v821 = vrcp.pop %v757
        %v822 = vrcp.pop %v758
        %v823 = vrcp.pop %v759
        %v824 = vrcp.pop %v760
        %v825 = vrcp.pop %v761
        %v826 = vrcp.pop %v762
        %v827 = vrcp.pop %v763
        %v828 = vrcp.pop %v764
        %v829 = vrcp.pop %v765
        %v830 = vrcp.pop %v766
        %v831 = vrcp.pop %v767
        %v832 = vrcp.pop %v768
        %v833 = vrcp.pop %v769
        %v834 = vrcp.pop %v770
        %v835 = vrcp.pop %v771
        %v836 = vrcp.pop %v772
        %v837 = vrcp.pop %v773
        %v838 = vrcp.pop %v774
        %v839 = vrcp.pop %v775
        %v840 = vrcp.pop %v776
        %v841 = vrcp.pop %v777
        %v842 = vrcp.pop %v778
        %v843 = vrcp.pop %v779
        %v844 = vrcp.pop %v780
        %v845 = vrcp.pop %v781
        %v846 = vrcp.pop %v782
        %v847 = vrcp.pop %v783
        %v848 = vrcp.pop %v784
        %v849 = vrcp.pop %v785
        %v850 = vrcp.pop %v786
        %v851 = vrcp.pop %v787
        %v852 = vrcp.pop %v788
        %v853 = vrcp.pop %v789
        %v854 = vrcp.pop %v790
        %v855 = vrcp.pop %v791
        %v856 = vrcp.pop %v792
        %v857 = vrcp.pop %v793
        %v858 = vrcp.pop %v794
        %v859 = vrcp.pop %v795
        %v860 = vrcp.pop %v796
        %v861 = vrcp.pop %v797
        %v862 = vrcp.pop %v798
        %v863 = vrcp.pop %v799
        %v864 = vrcp.pop %v800
        %v865 = vrcp.pop %v801
        %v866 = vrcp.pop %v802
        %v867 = vrcp.pop %v803
        %v868 = vrcp.pop %v804
        %v869 = vrcp.pop %v805
        %v870 = vrcp.pop %v806
        %v871 = vrcp.pop %v807
        %v872 = vrcp.pop %v808
        %v873 = vrcp.pop %v809
        %v874 = vrcp.pop %v810
        %v875 = vrcp.pop %v811
        %v876 = vrcp.pop %v812
        %v877 = vrcp.pop %v813
        %v878 = vrcp.pop %v814
        %v879 = vpack.c.bf16 %v817, %v815
        %v880 = vpack.c.bf16 %v818, %v816
        %v881 = vpack.c.bf16 %v821, %v819
        %v882 = vpack.c.bf16 %v822, %v820
        %v883 = vpack.c.bf16 %v825, %v823
        %v884 = vpack.c.bf16 %v826, %v824
        %v885 = vpack.c.bf16 %v829, %v827
        %v886 = vpack.c.bf16 %v830, %v828
        %v887 = vpack.c.bf16 %v833, %v831
        %v888 = vpack.c.bf16 %v834, %v832
        %v889 = vpack.c.bf16 %v837, %v835
        %v890 = vpack.c.bf16 %v838, %v836
        %v891 = vpack.c.bf16 %v841, %v839
        %v892 = vpack.c.bf16 %v842, %v840
        %v893 = vpack.c.bf16 %v845, %v843
        %v894 = vpack.c.bf16 %v846, %v844
        %v895 = vpack.c.bf16 %v849, %v847
        %v896 = vpack.c.bf16 %v850, %v848
        %v897 = vpack.c.bf16 %v853, %v851
        %v898 = vpack.c.bf16 %v854, %v852
        %v899 = vpack.c.bf16 %v857, %v855
        %v900 = vpack.c.bf16 %v858, %v856
        %v901 = vpack.c.bf16 %v861, %v859
        %v902 = vpack.c.bf16 %v862, %v860
        %v903 = vpack.c.bf16 %v865, %v863
        %v904 = vpack.c.bf16 %v866, %v864
        %v905 = vpack.c.bf16 %v869, %v867
        %v906 = vpack.c.bf16 %v870, %v868
        %v907 = vpack.c.bf16 %v873, %v871
        %v908 = vpack.c.bf16 %v874, %v872
        %v909 = vpack.c.bf16 %v877, %v875
        %v910 = vpack.c.bf16 %v878, %v876
        %v943 = vunpack.c.l.b16 %v879
        %v944 = vunpack.c.l.b16 %v880
        %v945 = vunpack.c.h.b16 %v879
        %v946 = vunpack.c.h.b16 %v880
        %v947 = vunpack.c.l.b16 %v881
        %v948 = vunpack.c.l.b16 %v882
        %v949 = vunpack.c.h.b16 %v881
        %v950 = vunpack.c.h.b16 %v882
        %v951 = vunpack.c.l.b16 %v883
        %v952 = vunpack.c.l.b16 %v884
        %v953 = vunpack.c.h.b16 %v883
        %v954 = vunpack.c.h.b16 %v884
        %v955 = vunpack.c.l.b16 %v885
        %v956 = vunpack.c.l.b16 %v886
        %v957 = vunpack.c.h.b16 %v885
        %v958 = vunpack.c.h.b16 %v886
        %v959 = vunpack.c.l.b16 %v887
        %v960 = vunpack.c.l.b16 %v888
        %v961 = vunpack.c.h.b16 %v887
        %v962 = vunpack.c.h.b16 %v888
        %v963 = vunpack.c.l.b16 %v889
        %v964 = vunpack.c.l.b16 %v890
        %v965 = vunpack.c.h.b16 %v889
        %v966 = vunpack.c.h.b16 %v890
        %v967 = vunpack.c.l.b16 %v891
        %v968 = vunpack.c.l.b16 %v892
        %v969 = vunpack.c.h.b16 %v891
        %v970 = vunpack.c.h.b16 %v892
        %v971 = vunpack.c.l.b16 %v893
        %v972 = vunpack.c.l.b16 %v894
        %v973 = vunpack.c.h.b16 %v893
        %v974 = vunpack.c.h.b16 %v894
        %v975 = vunpack.c.l.b16 %v895
        %v976 = vunpack.c.l.b16 %v896
        %v977 = vunpack.c.h.b16 %v895
        %v978 = vunpack.c.h.b16 %v896
        %v979 = vunpack.c.l.b16 %v897
        %v980 = vunpack.c.l.b16 %v898
        %v981 = vunpack.c.h.b16 %v897
        %v982 = vunpack.c.h.b16 %v898
        %v983 = vunpack.c.l.b16 %v899
        %v984 = vunpack.c.l.b16 %v900
        %v985 = vunpack.c.h.b16 %v899
        %v986 = vunpack.c.h.b16 %v900
        %v987 = vunpack.c.l.b16 %v901
        %v988 = vunpack.c.l.b16 %v902
        %v989 = vunpack.c.h.b16 %v901
        %v990 = vunpack.c.h.b16 %v902
        %v991 = vunpack.c.l.b16 %v903
        %v992 = vunpack.c.l.b16 %v904
        %v993 = vunpack.c.h.b16 %v903
        %v994 = vunpack.c.h.b16 %v904
        %v995 = vunpack.c.l.b16 %v905
        %v996 = vunpack.c.l.b16 %v906
        %v997 = vunpack.c.h.b16 %v905
        %v998 = vunpack.c.h.b16 %v906
        %v999 = vunpack.c.l.b16 %v907
        %v1000 = vunpack.c.l.b16 %v908
        %v1001 = vunpack.c.h.b16 %v907
        %v1002 = vunpack.c.h.b16 %v908
        %v1003 = vunpack.c.l.b16 %v909
        %v1004 = vunpack.c.l.b16 %v910
        %v1005 = vunpack.c.h.b16 %v909
        %v1006 = vunpack.c.h.b16 %v910
        %v1007 = vpack.c.b16 %v944, %v943
        %v1008 = vpack.c.b16 %v946, %v945
        %v1009 = vpack.c.b16 %v948, %v947
        %v1010 = vpack.c.b16 %v950, %v949
        %v1011 = vpack.c.b16 %v952, %v951
        %v1012 = vpack.c.b16 %v954, %v953
        %v1013 = vpack.c.b16 %v956, %v955
        %v1014 = vpack.c.b16 %v958, %v957
        %v1015 = vpack.c.b16 %v960, %v959
        %v1016 = vpack.c.b16 %v962, %v961
        %v1017 = vpack.c.b16 %v964, %v963
        %v1018 = vpack.c.b16 %v966, %v965
        %v1019 = vpack.c.b16 %v968, %v967
        %v1020 = vpack.c.b16 %v970, %v969
        %v1021 = vpack.c.b16 %v972, %v971
        %v1022 = vpack.c.b16 %v974, %v973
        %v1023 = vpack.c.b16 %v976, %v975
        %v1024 = vpack.c.b16 %v978, %v977
        %v1025 = vpack.c.b16 %v980, %v979
        %v1026 = vpack.c.b16 %v982, %v981
        %v1027 = vpack.c.b16 %v984, %v983
        %v1028 = vpack.c.b16 %v986, %v985
        %v1029 = vpack.c.b16 %v988, %v987
        %v1030 = vpack.c.b16 %v990, %v989
        %v1031 = vpack.c.b16 %v992, %v991
        %v1032 = vpack.c.b16 %v994, %v993
        %v1033 = vpack.c.b16 %v996, %v995
        %v1034 = vpack.c.b16 %v998, %v997
        %v1035 = vpack.c.b16 %v1000, %v999
        %v1036 = vpack.c.b16 %v1002, %v1001
        %v1037 = vpack.c.b16 %v1004, %v1003
        %v1038 = vpack.c.b16 %v1006, %v1005
        %vm1071 = vcmask 1043456
        %vm1072 = vcmask 1039364
        %vm1073 = vmor %vm1072, %vm1071
        %1074 = vst.msk [vmem:[%s234] sm:$0xff] %vm1073, %v1007
        %1075 = vst.msk [vmem:[%s234 + $0x8] sm:$0xff] %vm1073, %v1008
        %1076 = vst.msk [vmem:[%s234 + $0x10] sm:$0xff] %vm1073, %v1009
        %1077 = vst.msk [vmem:[%s234 + $0x18] sm:$0xff] %vm1073, %v1010
        %1078 = vst.msk [vmem:[%s234 + $0x20] sm:$0xff] %vm1073, %v1011
        %1079 = vst.msk [vmem:[%s234 + $0x28] sm:$0xff] %vm1073, %v1012
        %1080 = vst.msk [vmem:[%s234 + $0x30] sm:$0xff] %vm1073, %v1013
        %1081 = vst.msk [vmem:[%s234 + $0x38] sm:$0xff] %vm1073, %v1014
        %1082 = vst.msk [vmem:[%s234 + $0x40] sm:$0xff] %vm1073, %v1015
        %1083 = vst.msk [vmem:[%s234 + $0x48] sm:$0xff] %vm1073, %v1016
        %1084 = vst.msk [vmem:[%s234 + $0x50] sm:$0xff] %vm1073, %v1017
        %1085 = vst.msk [vmem:[%s234 + $0x58] sm:$0xff] %vm1073, %v1018
        %1086 = vst.msk [vmem:[%s234 + $0x60] sm:$0xff] %vm1073, %v1019
        %1087 = vst.msk [vmem:[%s234 + $0x68] sm:$0xff] %vm1073, %v1020
        %1088 = vst.msk [vmem:[%s234 + $0x70] sm:$0xff] %vm1073, %v1021
        %1089 = vst.msk [vmem:[%s234 + $0x78] sm:$0xff] %vm1073, %v1022
        %1090 = vst.msk [vmem:[%s234 + $0x80] sm:$0xff] %vm1073, %v1023
        %1091 = vst.msk [vmem:[%s234 + $0x88] sm:$0xff] %vm1073, %v1024
        %1092 = vst.msk [vmem:[%s234 + $0x90] sm:$0xff] %vm1073, %v1025
        %1093 = vst.msk [vmem:[%s234 + $0x98] sm:$0xff] %vm1073, %v1026
        %1094 = vst.msk [vmem:[%s234 + $0xa0] sm:$0xff] %vm1073, %v1027
        %1095 = vst.msk [vmem:[%s234 + $0xa8] sm:$0xff] %vm1073, %v1028
        %1096 = vst.msk [vmem:[%s234 + $0xb0] sm:$0xff] %vm1073, %v1029
        %1097 = vst.msk [vmem:[%s234 + $0xb8] sm:$0xff] %vm1073, %v1030
        %1098 = vst.msk [vmem:[%s234 + $0xc0] sm:$0xff] %vm1073, %v1031
        %1099 = vst.msk [vmem:[%s234 + $0xc8] sm:$0xff] %vm1073, %v1032
        %1100 = vst.msk [vmem:[%s234 + $0xd0] sm:$0xff] %vm1073, %v1033
        %1101 = vst.msk [vmem:[%s234 + $0xd8] sm:$0xff] %vm1073, %v1034
        %1102 = vst.msk [vmem:[%s234 + $0xe0] sm:$0xff] %vm1073, %v1035
        %1103 = vst.msk [vmem:[%s234 + $0xe8] sm:$0xff] %vm1073, %v1036
        %1104 = vst.msk [vmem:[%s234 + $0xf0] sm:$0xff] %vm1073, %v1037
        %1105 = vst.msk [vmem:[%s234 + $0xf8] sm:$0xff] %vm1073, %v1038
        %s1106 = smul.u32 32, %s23
        %p1107 = scmp.lt.s32.totalorder %s22, 1
        %s1108 = scalar_select %p1107, %s22, 1
        %p1109 = scmp.lt.s32.totalorder %s1106, 31
        %s1110 = scalar_select %p1109, %s1106, 31
        %s1111 = smul.addr %s1110, 2
        %s1112 = smul.addr %s1108, 64
        %s1113 = sadd.s32 %s1111, %s1112
        %s1114 = smul.addr %s1113, 4
        %s1115 = scalar_lea.vmem %s3, %s1114
        // Predicated region
        $region41: #{tpu_custom_call.1} parent=31 // pred_check
          %p1116 = pneg %p120
        $region42: #{tpu_custom_call.1} parent=31 // pred_check_branch
          %1118 = sbr.rel (%p1116) target = $region44
        $region43: #{tpu_custom_call.1} parent=31 // pred_region
          %s1119 = smul.u32 32, %s23
        $region44: #{tpu_custom_call.1} parent=31 // pred_fallthru
          _
      $region32: #{tpu_custom_call.1} parent=5 // pred_fallthru
        _
      %p1120 = scmp.le.s32.totalorder 2, %s13
      // Predicated region
      $region45: #{tpu_custom_call.1} parent=5 // pred_check
        %p1121 = pneg %p1120
      $region46: #{tpu_custom_call.1} parent=5 // pred_check_branch
        %1123 = sbr.rel (%p1121) target = $region48
      $region47: #{tpu_custom_call.1} parent=5 // pred_region
        %s1124 = ssub.s32 %s13, 2
        // Predicated region
        $region49: #{tpu_custom_call.1} parent=47 // pred_check
          %p1125 = pneg %p126
        $region50: #{tpu_custom_call.1} parent=47 // pred_check_branch
          %1127 = sbr.rel (%p1125) target = $region52
        $region51: #{tpu_custom_call.1} parent=47 // pred_region
          %s1128 = smul.u32 32, %s25
          %p1129 = scmp.lt.s32.totalorder %s24, 1
          %s1130 = scalar_select %p1129, %s24, 1
          %p1131 = scmp.lt.s32.totalorder %s1128, 31
          %s1132 = scalar_select %p1131, %s1128, 31
          %s1133 = smul.addr %s1132, 2
          %s1134 = smul.addr %s1130, 64
          %s1135 = sadd.s32 %s1133, %s1134
          %s1136 = smul.addr %s1135, 4
          %s1137 = scalar_lea.vmem %s3, %s1136
        $region52: #{tpu_custom_call.1} parent=47 // pred_fallthru
          _
      $region48: #{tpu_custom_call.1} parent=5 // pred_fallthru
        _
    $region6: #{tpu_custom_call.1} parent=1 // loop_footer
      %s17 = sadd.s32 1, %s13
    $region7: #{tpu_custom_call.1} parent=1 // loop_footer_branch
      %12 = sbr.rel target = $region3
    $region8: #{tpu_custom_call.1} parent=1 // loop_exit
      _
    %1138 = vsyncpa [#allocation3], 1
    %s1139 = scalar_lea.sflag [#allocation3], 1
    %1140 = vsyncpa %s1139, 1
    %1141 = vsyncpa [#allocation5], 1

</llo_original>
